<compile_context>
chip_gen: v5e
topology: v5e:2x2
jax: 0.10.0
libtpu: 0.0.40
codegen_flags: <defaults>
</compile_context>

<pallas_src>
import numpy as np
import jax
import jax.numpy as jnp
from jax import lax
from jax.experimental import pallas as pl
from jax.experimental.pallas import tpu as pltpu

EPS = 1e-5
_TAPS = [(dy, dx) for dy in (-1, 0, 1) for dx in (-1, 0, 1)]


# --------------------------------- kernel ------------------------------------

def _make_bga2_kernel(H, W, Ccat, Cout, Cin_pad, Nb):
    L = H * W  # flattened spatial, lives in the lane dimension

    def kernel(x_ref, m_ref, w1_ref, wp_ref, bp_ref, wo_ref, o_ref):
        masks = m_ref[...]          # (8, L) f32 border-validity, non-center taps
        w1 = w1_ref[...]            # (3*Cout + Cin_pad, 9*Ccat) bf16 block-diag
        wp = wp_ref[...]            # (Cout, Cin_pad)            bf16
        bp = bp_ref[...]            # (Cout, 1)                  f32   (live bias)
        wo = wo_ref[...]            # (Cout, 9*Cout)             bf16

        def im2col(x):
            # x: (C, L) f32 -> (9*C, L) f32; rows are tap-major, channel-minor,
            # matching the weight column layout built in to_kernel_params.
            pieces = []
            mi = 0
            for dy, dx in _TAPS:
                d = dy * W + dx
                if d == 0:
                    pieces.append(x)
                else:
                    shifted = pltpu.roll(x, shift=(-d) % L, axis=1)
                    pieces.append(shifted * masks[mi:mi + 1, :])
                    mi += 1
            return jnp.concatenate(pieces, axis=0)

        def instance_norm(y):
            # per-channel (per-row) normalization over the L spatial lanes;
            # E[x^2]-mean^2 form: two independent lane reductions.
            mean = jnp.mean(y, axis=1, keepdims=True)
            ex2 = jnp.mean(y * y, axis=1, keepdims=True)
            return (y - mean) * lax.rsqrt(ex2 - mean * mean + EPS)

        def sigmoid(y):
            # exp + approximate reciprocal both land on the EUP slot
            return pl.reciprocal(1.0 + jnp.exp(-y), approx=True)

        for i in range(Nb):                       # static, small unroll
            x = x_ref[i]                          # (Ccat, L) f32 = [L-chs | S-chs(padded)]

            # One im2col + one block-diagonal matmul covers lagself, lagout,
            # smself and smout's 3x3 conv (biases before IN are dead, dropped).
            col = im2col(x).astype(jnp.bfloat16)              # (9*Ccat, L)
            y = jnp.dot(w1, col, preferred_element_type=jnp.float32)
            y = instance_norm(y)                              # (3*Cout+Cin_pad, L)

            l_self = y[0:Cout]                                # lagself: IN only
            l_out = sigmoid(y[Cout:2 * Cout])                 # lagout:  IN + sigmoid
            s_self = y[2 * Cout:3 * Cout]                     # smself:  IN only
            s_mid = y[3 * Cout:3 * Cout + Cin_pad]            # smout 3x3 + IN

            # smout pointwise 1x1 (K padded to Cin_pad=8) + live bias + sigmoid
            s_out = sigmoid(
                jnp.dot(wp, s_mid.astype(jnp.bfloat16),
                        preferred_element_type=jnp.float32) + bp)

            fused = s_out * l_self + s_self * l_out           # (Cout, L) f32

            # final ou: 3x3 conv + InstanceNorm (bias dead, dropped)
            col_f = im2col(fused).astype(jnp.bfloat16)        # (9*Cout, L)
            out = jnp.dot(wo, col_f, preferred_element_type=jnp.float32)
            o_ref[i] = instance_norm(out).astype(o_ref.dtype)

    return kernel


# ------------------------------ pallas wrapper --------------------------------

def _border_masks(H, W):
    # (8, H*W) f32 validity masks for the 8 non-center 3x3 taps, tap-major
    # order (dy outer, dx inner), precomputed once on the host.
    row = np.arange(H * W) // W
    col = np.arange(H * W) % W
    rows = []
    for dy in (-1, 0, 1):
        for dx in (-1, 0, 1):
            if dy == 0 and dx == 0:
                continue
            m = np.ones(H * W, np.float32)
            if dy == -1:
                m *= (row >= 1)
            if dy == 1:
                m *= (row <= H - 2)
            if dx == -1:
                m *= (col >= 1)
            if dx == 1:
                m *= (col <= W - 2)
            rows.append(m.astype(np.float32))
    return jnp.asarray(np.stack(rows, axis=0))


def _pick_nb(N, max_nb=8):
    # Largest images-per-step that still leaves >=4 grid steps (>=2 per
    # TensorCore on v7x) so BlockSpec double-buffering has a steady state.
    best = 1
    for nb in range(1, min(N, max_nb) + 1):
        if N % nb == 0 and (N // nb) >= 4:
            best = nb
    return best


def bga2_forward(l_nchw, s_nchw, kp):
    N, Cout, H, W = l_nchw.shape
    Cin = s_nchw.shape[1]
    L = H * W
    Cin_pad = kp['cin_pad']
    Ccat = Cout + Cin_pad

    # NCHW -> (N, C, H*W) (pure reshape); pad S channels to a sublane tile and
    # concatenate the two branches into one lane-dense input slab.
    lx = l_nchw.reshape(N, Cout, L).astype(jnp.float32)
    sx = s_nchw.reshape(N, Cin, L).astype(jnp.float32)
    if Cin_pad > Cin:
        sx = jnp.pad(sx, ((0, 0), (0, Cin_pad - Cin), (0, 0)))
    x_cat = jnp.concatenate([lx, sx], axis=1)           # (N, Ccat, L)

    masks = _border_masks(H, W)                         # (8, L)

    Nb = _pick_nb(N)
    grid = (N // Nb,)

    weights = [kp['w1'], kp['wp'], kp['bp'], kp['wo']]
    in_specs = [
        pl.BlockSpec((Nb, Ccat, L), lambda n: (n, 0, 0)),
        pl.BlockSpec(masks.shape, lambda n: (0, 0)),
    ] + [pl.BlockSpec(w.shape, lambda n: (0, 0)) for w in weights]
    out_spec = pl.BlockSpec((Nb, Cout, L), lambda n: (n, 0, 0))

    out = pl.pallas_call(
        _make_bga2_kernel(H, W, Ccat, Cout, Cin_pad, Nb),
        out_shape=jax.ShapeDtypeStruct((N, Cout, L), jnp.float32),
        grid_spec=pltpu.PrefetchScalarGridSpec(
            num_scalar_prefetch=0,
            grid=grid,
            in_specs=in_specs,
            out_specs=out_spec),
        compiler_params=pltpu.CompilerParams(
            dimension_semantics=("parallel",)),
    )(x_cat, masks, *weights)
    return out.reshape(N, Cout, H, W)


# ------------------------- parameters (deterministic) -------------------------

def init_params_torch_layout(key, cin, cout):
    ks = jax.random.split(key, 16)
    cw = lambda k, co, ci, kh, kw: jax.random.normal(k, (co, ci, kh, kw), jnp.float32) * 0.1
    bs = lambda k, c: jax.random.normal(k, (c,), jnp.float32) * 0.05
    return {
        'smself_dw': cw(ks[0], cin, 1, 3, 3),  'smself_db': bs(ks[1], cin),
        'smself_pw': cw(ks[2], cout, cin, 1, 1), 'smself_pb': bs(ks[3], cout),
        'lagself_dw': cw(ks[4], cout, 1, 3, 3), 'lagself_db': bs(ks[5], cout),
        'lagself_pw': cw(ks[6], cout, cout, 1, 1), 'lagself_pb': bs(ks[7], cout),
        'smout_w': cw(ks[8], cin, cin, 3, 3),  'smout_b': bs(ks[9], cin),
        'smout_pw': cw(ks[10], cout, cin, 1, 1), 'smout_pb': bs(ks[11], cout),
        'lagout_w': cw(ks[12], cout, cout, 3, 3), 'lagout_b': bs(ks[13], cout),
        'ou_w': cw(ks[14], cout, cout, 3, 3),  'ou_b': bs(ks[15], cout),
    }


def to_kernel_params(pt, *, sublane=8):
    """Build the fused/blocked bf16 weights consumed by the kernel.

    Biases that are immediately followed by InstanceNorm (lagself, lagout,
    smself, smout-3x3, ou) are exactly cancelled by the mean subtraction and
    are dropped; only the smout pointwise bias (bp) is kept.
    """
    def conv9(w):  # torch (O, I, 3, 3) -> (O, 9, I), tap index = 3*ky + kx
        O, I = w.shape[0], w.shape[1]
        return jnp.transpose(w, (0, 2, 3, 1)).reshape(O, 9, I)

    def fused_dsconv9(dw, pw):
        # depthwise 3x3 (C,1,3,3) + pointwise 1x1 (O,C,1,1) folded into an
        # exact full 3x3 conv (O, 9, C).
        C = dw.shape[0]
        dwt = jnp.transpose(dw[:, 0], (1, 2, 0)).reshape(9, C)   # (9, C)
        pw2 = pw[:, :, 0, 0]                                     # (O, C)
        return pw2[:, None, :] * dwt[None, :, :]                 # (O, 9, C)

    Cin = pt['smout_w'].shape[0]
    Cout = pt['ou_w'].shape[0]
    Cin_pad = -(-Cin // sublane) * sublane
    Ccat = Cout + Cin_pad

    lagself9 = fused_dsconv9(pt['lagself_dw'], pt['lagself_pw'])   # (Cout,9,Cout)
    smself9 = fused_dsconv9(pt['smself_dw'], pt['smself_pw'])      # (Cout,9,Cin)
    lagout9 = conv9(pt['lagout_w'])                                # (Cout,9,Cout)
    smout9 = conv9(pt['smout_w'])                                  # (Cin,9,Cin)

    # Block-diagonal merged weight for the single branch matmul.  Columns per
    # tap are ordered [L channels (Cout) | S channels (Cin_pad)], matching the
    # concatenated-and-padded kernel input x_cat.
    rows = 3 * Cout + Cin_pad
    w1 = jnp.zeros((rows, 9, Ccat), jnp.float32)
    w1 = w1.at[0:Cout, :, 0:Cout].set(lagself9)                    # lagself
    w1 = w1.at[Cout:2 * Cout, :, 0:Cout].set(lagout9)              # lagout
    w1 = w1.at[2 * Cout:3 * Cout, :, Cout:Cout + Cin].set(smself9)  # smself
    w1 = w1.at[3 * Cout:3 * Cout + Cin, :, Cout:Cout + Cin].set(smout9)  # smout 3x3
    w1 = w1.reshape(rows, 9 * Ccat)

    wp = jnp.zeros((Cout, Cin_pad), jnp.float32)
    wp = wp.at[:, :Cin].set(pt['smout_pw'][:, :, 0, 0])
    wo = conv9(pt['ou_w']).reshape(Cout, 9 * Cout)

    return {
        'w1': w1.astype(jnp.bfloat16),
        'wp': wp.astype(jnp.bfloat16),
        'bp': pt['smout_pb'].reshape(-1, 1).astype(jnp.float32),
        'wo': wo.astype(jnp.bfloat16),
        'cin_pad': int(Cin_pad),
    }


# --------------------------- pure-JAX reference -------------------------------

def _ref_conv(x, w, b, groups=1):
    y = lax.conv_general_dilated(x, w, (1, 1), 'SAME',
                                 dimension_numbers=('NCHW', 'OIHW', 'NCHW'),
                                 feature_group_count=groups,
                                 precision=lax.Precision.HIGHEST)
    return y + b[None, :, None, None]


def _ref_in(x):
    m = x.mean(axis=(2, 3), keepdims=True)
    v = ((x - m) ** 2).mean(axis=(2, 3), keepdims=True)
    return (x - m) * lax.rsqrt(v + EPS)


def bga2_reference(Lx, Sx, pt):
    def dsconv(x, dw, db, pw, pb):
        return _ref_conv(_ref_conv(x, dw, db, groups=x.shape[1]), pw, pb)
    Lself = _ref_in(dsconv(Lx, pt['lagself_dw'], pt['lagself_db'],
                           pt['lagself_pw'], pt['lagself_pb']))
    Lout = jax.nn.sigmoid(_ref_in(_ref_conv(Lx, pt['lagout_w'], pt['lagout_b'])))
    Sself = _ref_in(dsconv(Sx, pt['smself_dw'], pt['smself_db'],
                           pt['smself_pw'], pt['smself_pb']))
    Sout = jax.nn.sigmoid(_ref_conv(_ref_in(_ref_conv(Sx, pt['smout_w'], pt['smout_b'])),
                                    pt['smout_pw'], pt['smout_pb']))
    Lself = Sout * Lself
    Sself = Sself * Lout
    out = Sself + Lself
    return _ref_in(_ref_conv(out, pt['ou_w'], pt['ou_b']))


# ----------------------------------- main --------------------------------------

if __name__ == "__main__":
    key = jax.random.PRNGKey(0)
    kL, kS, kP = jax.random.split(key, 3)
    N, Cin, Cout, H, W = 2, 4, 8, 16, 16

    L_in = jax.random.normal(kL, (N, Cout, H, W), jnp.float32)   # "large" branch
    S_in = jax.random.normal(kS, (N, Cin, H, W), jnp.float32)    # "small" branch

    pt = init_params_torch_layout(kP, Cin, Cout)
    kp = to_kernel_params(pt)

    out = jax.block_until_ready(bga2_forward(L_in, S_in, kp))
    assert out.shape == (N, Cout, H, W)

    ref = bga2_reference(L_in, S_in, pt)
    # Tolerance covers bf16 MXU operands (f32 accumulation) + approx reciprocal
    # in the sigmoids; structure/weight mapping errors would be O(1), not O(1e-2).
    if not np.allclose(np.asarray(out), np.asarray(ref), atol=5e-2, rtol=5e-2):
        raise AssertionError(
            f"mismatch: max abs err = {float(jnp.max(jnp.abs(out - ref)))}")
    print("KERNEL_OK")
</pallas_src>

<mosaic_0001>
module attributes {stable_mosaic.version = 11 : i64} {
  func.func @kernel(%arg0: i32, %arg1: memref<1x16x256xf32, #tpu.memory_space<vmem>>, %arg2: memref<8x256xf32, #tpu.memory_space<vmem>>, %arg3: memref<32x144xbf16, #tpu.memory_space<vmem>>, %arg4: memref<8x8xbf16, #tpu.memory_space<vmem>>, %arg5: memref<8x1xf32, #tpu.memory_space<vmem>>, %arg6: memref<8x72xbf16, #tpu.memory_space<vmem>>, %arg7: memref<1x8x256xf32, #tpu.memory_space<vmem>>) attributes {dimension_semantics = [#tpu.dimension_semantics<parallel>], iteration_bounds = array<i64: 2>, scalar_prefetch = 0 : i64, scratch_operands = 0 : i64, tpu.core_type = #tpu.core_type<tc>, window_params = [{transform_indices = @transform_0, window_bounds = array<i64: 1, 16, 256>}, {pipeline_mode = #tpu.pipeline_mode<synchronous>, transform_indices = @transform_1, window_bounds = array<i64: 8, 256>}, {pipeline_mode = #tpu.pipeline_mode<synchronous>, transform_indices = @transform_2, window_bounds = array<i64: 32, 144>}, {pipeline_mode = #tpu.pipeline_mode<synchronous>, transform_indices = @transform_3, window_bounds = array<i64: 8, 8>}, {pipeline_mode = #tpu.pipeline_mode<synchronous>, transform_indices = @transform_4, window_bounds = array<i64: 8, 1>}, {pipeline_mode = #tpu.pipeline_mode<synchronous>, transform_indices = @transform_5, window_bounds = array<i64: 8, 72>}, {transform_indices = @transform_6, window_bounds = array<i64: 1, 8, 256>}]} {
    %c0 = arith.constant 0 : index
    %c0_0 = arith.constant 0 : index
    %0 = vector.load %arg2[%c0, %c0_0] : memref<8x256xf32, #tpu.memory_space<vmem>>, vector<8x256xf32>
    %c0_1 = arith.constant 0 : index
    %c0_2 = arith.constant 0 : index
    %1 = vector.load %arg3[%c0_1, %c0_2] : memref<32x144xbf16, #tpu.memory_space<vmem>>, vector<32x144xbf16>
    %c0_3 = arith.constant 0 : index
    %c0_4 = arith.constant 0 : index
    %2 = vector.load %arg4[%c0_3, %c0_4] : memref<8x8xbf16, #tpu.memory_space<vmem>>, vector<8x8xbf16>
    %c0_5 = arith.constant 0 : index
    %c0_6 = arith.constant 0 : index
    %3 = vector.load %arg5[%c0_5, %c0_6] : memref<8x1xf32, #tpu.memory_space<vmem>>, vector<8x1xf32>
    %c0_7 = arith.constant 0 : index
    %c0_8 = arith.constant 0 : index
    %4 = vector.load %arg6[%c0_7, %c0_8] : memref<8x72xbf16, #tpu.memory_space<vmem>>, vector<8x72xbf16>
    %c0_9 = arith.constant 0 : index
    %c0_10 = arith.constant 0 : index
    %c0_11 = arith.constant 0 : index
    %5 = vector.load %arg1[%c0_9, %c0_10, %c0_11] : memref<1x16x256xf32, #tpu.memory_space<vmem>>, vector<1x16x256xf32>
    %6 = vector.shape_cast %5 : vector<1x16x256xf32> to vector<16x256xf32>
    %c17_i32 = arith.constant 17 : i32
    %7 = tpu.dynamic_rotate %6 by %c17_i32 dim 1 : vector<16x256xf32>, i32 -> vector<16x256xf32>
    %8 = vector.extract_strided_slice %0 {offsets = [0, 0], sizes = [1, 256], strides = [1, 1]} : vector<8x256xf32> to vector<1x256xf32>
    %9 = vector.broadcast %8 : vector<1x256xf32> to vector<16x256xf32>
    %10 = arith.mulf %7, %9 : vector<16x256xf32>
    %c16_i32 = arith.constant 16 : i32
    %11 = tpu.dynamic_rotate %6 by %c16_i32 dim 1 : vector<16x256xf32>, i32 -> vector<16x256xf32>
    %12 = vector.extract_strided_slice %0 {offsets = [1, 0], sizes = [1, 256], strides = [1, 1]} : vector<8x256xf32> to vector<1x256xf32>
    %13 = vector.broadcast %12 : vector<1x256xf32> to vector<16x256xf32>
    %14 = arith.mulf %11, %13 : vector<16x256xf32>
    %c15_i32 = arith.constant 15 : i32
    %15 = tpu.dynamic_rotate %6 by %c15_i32 dim 1 : vector<16x256xf32>, i32 -> vector<16x256xf32>
    %16 = vector.extract_strided_slice %0 {offsets = [2, 0], sizes = [1, 256], strides = [1, 1]} : vector<8x256xf32> to vector<1x256xf32>
    %17 = vector.broadcast %16 : vector<1x256xf32> to vector<16x256xf32>
    %18 = arith.mulf %15, %17 : vector<16x256xf32>
    %c1_i32 = arith.constant 1 : i32
    %19 = tpu.dynamic_rotate %6 by %c1_i32 dim 1 : vector<16x256xf32>, i32 -> vector<16x256xf32>
    %20 = vector.extract_strided_slice %0 {offsets = [3, 0], sizes = [1, 256], strides = [1, 1]} : vector<8x256xf32> to vector<1x256xf32>
    %21 = vector.broadcast %20 : vector<1x256xf32> to vector<16x256xf32>
    %22 = arith.mulf %19, %21 : vector<16x256xf32>
    %c255_i32 = arith.constant 255 : i32
    %23 = tpu.dynamic_rotate %6 by %c255_i32 dim 1 : vector<16x256xf32>, i32 -> vector<16x256xf32>
    %24 = vector.extract_strided_slice %0 {offsets = [4, 0], sizes = [1, 256], strides = [1, 1]} : vector<8x256xf32> to vector<1x256xf32>
    %25 = vector.broadcast %24 : vector<1x256xf32> to vector<16x256xf32>
    %26 = arith.mulf %23, %25 : vector<16x256xf32>
    %c241_i32 = arith.constant 241 : i32
    %27 = tpu.dynamic_rotate %6 by %c241_i32 dim 1 : vector<16x256xf32>, i32 -> vector<16x256xf32>
    %28 = vector.extract_strided_slice %0 {offsets = [5, 0], sizes = [1, 256], strides = [1, 1]} : vector<8x256xf32> to vector<1x256xf32>
    %29 = vector.broadcast %28 : vector<1x256xf32> to vector<16x256xf32>
    %30 = arith.mulf %27, %29 : vector<16x256xf32>
    %c240_i32 = arith.constant 240 : i32
    %31 = tpu.dynamic_rotate %6 by %c240_i32 dim 1 : vector<16x256xf32>, i32 -> vector<16x256xf32>
    %32 = vector.extract_strided_slice %0 {offsets = [6, 0], sizes = [1, 256], strides = [1, 1]} : vector<8x256xf32> to vector<1x256xf32>
    %33 = vector.broadcast %32 : vector<1x256xf32> to vector<16x256xf32>
    %34 = arith.mulf %31, %33 : vector<16x256xf32>
    %c239_i32 = arith.constant 239 : i32
    %35 = tpu.dynamic_rotate %6 by %c239_i32 dim 1 : vector<16x256xf32>, i32 -> vector<16x256xf32>
    %36 = vector.extract_strided_slice %0 {offsets = [7, 0], sizes = [1, 256], strides = [1, 1]} : vector<8x256xf32> to vector<1x256xf32>
    %37 = vector.broadcast %36 : vector<1x256xf32> to vector<16x256xf32>
    %38 = arith.mulf %35, %37 : vector<16x256xf32>
    %39 = tpu.concatenate %10, %14, %18, %22, %6, %26, %30, %34, %38 in 0 : vector<16x256xf32>, vector<16x256xf32>, vector<16x256xf32>, vector<16x256xf32>, vector<16x256xf32>, vector<16x256xf32>, vector<16x256xf32>, vector<16x256xf32>, vector<16x256xf32> -> vector<144x256xf32>
    %40 = arith.truncf %39 : vector<144x256xf32> to vector<144x256xbf16>
    %cst = arith.constant dense<0.000000e+00> : vector<32x256xf32>
    %41 = tpu.matmul %1, %40, %cst {dimension_numbers = #tpu.dot_dimension_numbers<[1], [0], [0], [1], [0, 0, 1, 1], [], []>} : vector<32x144xbf16>, vector<144x256xbf16>, vector<32x256xf32> -> vector<32x256xf32>
    %cst_12 = arith.constant dense<0.000000e+00> : vector<32xf32>
    %42 = vector.multi_reduction <add>, %41, %cst_12 [1] : vector<32x256xf32> to vector<32xf32>
    %43 = vector.shape_cast %42 : vector<32xf32> to vector<32x1xf32>
    %cst_13 = arith.constant 2.560000e+02 : f32
    %44 = vector.broadcast %cst_13 : f32 to vector<32x1xf32>
    %45 = arith.divf %43, %44 : vector<32x1xf32>
    %46 = arith.mulf %41, %41 : vector<32x256xf32>
    %cst_14 = arith.constant dense<0.000000e+00> : vector<32xf32>
    %47 = vector.multi_reduction <add>, %46, %cst_14 [1] : vector<32x256xf32> to vector<32xf32>
    %48 = vector.shape_cast %47 : vector<32xf32> to vector<32x1xf32>
    %cst_15 = arith.constant 2.560000e+02 : f32
    %49 = vector.broadcast %cst_15 : f32 to vector<32x1xf32>
    %50 = arith.divf %48, %49 : vector<32x1xf32>
    %51 = vector.broadcast %45 : vector<32x1xf32> to vector<32x256xf32>
    %52 = arith.subf %41, %51 : vector<32x256xf32>
    %53 = arith.mulf %45, %45 : vector<32x1xf32>
    %54 = arith.subf %50, %53 : vector<32x1xf32>
    %cst_16 = arith.constant 9.99999974E-6 : f32
    %55 = vector.broadcast %cst_16 : f32 to vector<32x1xf32>
    %56 = arith.addf %54, %55 : vector<32x1xf32>
    %57 = math.rsqrt %56 : vector<32x1xf32>
    %58 = vector.broadcast %57 : vector<32x1xf32> to vector<32x256xf32>
    %59 = arith.mulf %52, %58 : vector<32x256xf32>
    %60 = vector.extract_strided_slice %59 {offsets = [0, 0], sizes = [8, 256], strides = [1, 1]} : vector<32x256xf32> to vector<8x256xf32>
    %61 = vector.extract_strided_slice %59 {offsets = [8, 0], sizes = [8, 256], strides = [1, 1]} : vector<32x256xf32> to vector<8x256xf32>
    %cst_17 = arith.constant 0.000000e+00 : f32
    %62 = vector.broadcast %cst_17 : f32 to vector<8x256xf32>
    %63 = arith.subf %62, %61 : vector<8x256xf32>
    %64 = math.exp %63 : vector<8x256xf32>
    %cst_18 = arith.constant 1.000000e+00 : f32
    %65 = vector.broadcast %cst_18 : f32 to vector<8x256xf32>
    %66 = arith.addf %65, %64 : vector<8x256xf32>
    %67 = tpu.reciprocal %66 {approx = true} : vector<8x256xf32> -> vector<8x256xf32>
    %68 = vector.extract_strided_slice %59 {offsets = [16, 0], sizes = [8, 256], strides = [1, 1]} : vector<32x256xf32> to vector<8x256xf32>
    %69 = vector.extract_strided_slice %59 {offsets = [24, 0], sizes = [8, 256], strides = [1, 1]} : vector<32x256xf32> to vector<8x256xf32>
    %70 = arith.truncf %69 : vector<8x256xf32> to vector<8x256xbf16>
    %cst_19 = arith.constant dense<0.000000e+00> : vector<8x256xf32>
    %71 = tpu.matmul %2, %70, %cst_19 {dimension_numbers = #tpu.dot_dimension_numbers<[1], [0], [0], [1], [0, 0, 1, 1], [], []>} : vector<8x8xbf16>, vector<8x256xbf16>, vector<8x256xf32> -> vector<8x256xf32>
    %72 = vector.broadcast %3 : vector<8x1xf32> to vector<8x256xf32>
    %73 = arith.addf %71, %72 : vector<8x256xf32>
    %cst_20 = arith.constant 0.000000e+00 : f32
    %74 = vector.broadcast %cst_20 : f32 to vector<8x256xf32>
    %75 = arith.subf %74, %73 : vector<8x256xf32>
    %76 = math.exp %75 : vector<8x256xf32>
    %cst_21 = arith.constant 1.000000e+00 : f32
    %77 = vector.broadcast %cst_21 : f32 to vector<8x256xf32>
    %78 = arith.addf %77, %76 : vector<8x256xf32>
    %79 = tpu.reciprocal %78 {approx = true} : vector<8x256xf32> -> vector<8x256xf32>
    %80 = arith.mulf %79, %60 : vector<8x256xf32>
    %81 = arith.mulf %68, %67 : vector<8x256xf32>
    %82 = arith.addf %80, %81 : vector<8x256xf32>
    %c17_i32_22 = arith.constant 17 : i32
    %83 = tpu.dynamic_rotate %82 by %c17_i32_22 dim 1 : vector<8x256xf32>, i32 -> vector<8x256xf32>
    %84 = vector.extract_strided_slice %0 {offsets = [0, 0], sizes = [1, 256], strides = [1, 1]} : vector<8x256xf32> to vector<1x256xf32>
    %85 = vector.broadcast %84 : vector<1x256xf32> to vector<8x256xf32>
    %86 = arith.mulf %83, %85 : vector<8x256xf32>
    %c16_i32_23 = arith.constant 16 : i32
    %87 = tpu.dynamic_rotate %82 by %c16_i32_23 dim 1 : vector<8x256xf32>, i32 -> vector<8x256xf32>
    %88 = vector.extract_strided_slice %0 {offsets = [1, 0], sizes = [1, 256], strides = [1, 1]} : vector<8x256xf32> to vector<1x256xf32>
    %89 = vector.broadcast %88 : vector<1x256xf32> to vector<8x256xf32>
    %90 = arith.mulf %87, %89 : vector<8x256xf32>
    %c15_i32_24 = arith.constant 15 : i32
    %91 = tpu.dynamic_rotate %82 by %c15_i32_24 dim 1 : vector<8x256xf32>, i32 -> vector<8x256xf32>
    %92 = vector.extract_strided_slice %0 {offsets = [2, 0], sizes = [1, 256], strides = [1, 1]} : vector<8x256xf32> to vector<1x256xf32>
    %93 = vector.broadcast %92 : vector<1x256xf32> to vector<8x256xf32>
    %94 = arith.mulf %91, %93 : vector<8x256xf32>
    %c1_i32_25 = arith.constant 1 : i32
    %95 = tpu.dynamic_rotate %82 by %c1_i32_25 dim 1 : vector<8x256xf32>, i32 -> vector<8x256xf32>
    %96 = vector.extract_strided_slice %0 {offsets = [3, 0], sizes = [1, 256], strides = [1, 1]} : vector<8x256xf32> to vector<1x256xf32>
    %97 = vector.broadcast %96 : vector<1x256xf32> to vector<8x256xf32>
    %98 = arith.mulf %95, %97 : vector<8x256xf32>
    %c255_i32_26 = arith.constant 255 : i32
    %99 = tpu.dynamic_rotate %82 by %c255_i32_26 dim 1 : vector<8x256xf32>, i32 -> vector<8x256xf32>
    %100 = vector.extract_strided_slice %0 {offsets = [4, 0], sizes = [1, 256], strides = [1, 1]} : vector<8x256xf32> to vector<1x256xf32>
    %101 = vector.broadcast %100 : vector<1x256xf32> to vector<8x256xf32>
    %102 = arith.mulf %99, %101 : vector<8x256xf32>
    %c241_i32_27 = arith.constant 241 : i32
    %103 = tpu.dynamic_rotate %82 by %c241_i32_27 dim 1 : vector<8x256xf32>, i32 -> vector<8x256xf32>
    %104 = vector.extract_strided_slice %0 {offsets = [5, 0], sizes = [1, 256], strides = [1, 1]} : vector<8x256xf32> to vector<1x256xf32>
    %105 = vector.broadcast %104 : vector<1x256xf32> to vector<8x256xf32>
    %106 = arith.mulf %103, %105 : vector<8x256xf32>
    %c240_i32_28 = arith.constant 240 : i32
    %107 = tpu.dynamic_rotate %82 by %c240_i32_28 dim 1 : vector<8x256xf32>, i32 -> vector<8x256xf32>
    %108 = vector.extract_strided_slice %0 {offsets = [6, 0], sizes = [1, 256], strides = [1, 1]} : vector<8x256xf32> to vector<1x256xf32>
    %109 = vector.broadcast %108 : vector<1x256xf32> to vector<8x256xf32>
    %110 = arith.mulf %107, %109 : vector<8x256xf32>
    %c239_i32_29 = arith.constant 239 : i32
    %111 = tpu.dynamic_rotate %82 by %c239_i32_29 dim 1 : vector<8x256xf32>, i32 -> vector<8x256xf32>
    %112 = vector.extract_strided_slice %0 {offsets = [7, 0], sizes = [1, 256], strides = [1, 1]} : vector<8x256xf32> to vector<1x256xf32>
    %113 = vector.broadcast %112 : vector<1x256xf32> to vector<8x256xf32>
    %114 = arith.mulf %111, %113 : vector<8x256xf32>
    %115 = tpu.concatenate %86, %90, %94, %98, %82, %102, %106, %110, %114 in 0 : vector<8x256xf32>, vector<8x256xf32>, vector<8x256xf32>, vector<8x256xf32>, vector<8x256xf32>, vector<8x256xf32>, vector<8x256xf32>, vector<8x256xf32>, vector<8x256xf32> -> vector<72x256xf32>
    %116 = arith.truncf %115 : vector<72x256xf32> to vector<72x256xbf16>
    %cst_30 = arith.constant dense<0.000000e+00> : vector<8x256xf32>
    %117 = tpu.matmul %4, %116, %cst_30 {dimension_numbers = #tpu.dot_dimension_numbers<[1], [0], [0], [1], [0, 0, 1, 1], [], []>} : vector<8x72xbf16>, vector<72x256xbf16>, vector<8x256xf32> -> vector<8x256xf32>
    %cst_31 = arith.constant dense<0.000000e+00> : vector<8xf32>
    %118 = vector.multi_reduction <add>, %117, %cst_31 [1] : vector<8x256xf32> to vector<8xf32>
    %119 = vector.shape_cast %118 : vector<8xf32> to vector<8x1xf32>
    %cst_32 = arith.constant 2.560000e+02 : f32
    %120 = vector.broadcast %cst_32 : f32 to vector<8x1xf32>
    %121 = arith.divf %119, %120 : vector<8x1xf32>
    %122 = arith.mulf %117, %117 : vector<8x256xf32>
    %cst_33 = arith.constant dense<0.000000e+00> : vector<8xf32>
    %123 = vector.multi_reduction <add>, %122, %cst_33 [1] : vector<8x256xf32> to vector<8xf32>
    %124 = vector.shape_cast %123 : vector<8xf32> to vector<8x1xf32>
    %cst_34 = arith.constant 2.560000e+02 : f32
    %125 = vector.broadcast %cst_34 : f32 to vector<8x1xf32>
    %126 = arith.divf %124, %125 : vector<8x1xf32>
    %127 = vector.broadcast %121 : vector<8x1xf32> to vector<8x256xf32>
    %128 = arith.subf %117, %127 : vector<8x256xf32>
    %129 = arith.mulf %121, %121 : vector<8x1xf32>
    %130 = arith.subf %126, %129 : vector<8x1xf32>
    %cst_35 = arith.constant 9.99999974E-6 : f32
    %131 = vector.broadcast %cst_35 : f32 to vector<8x1xf32>
    %132 = arith.addf %130, %131 : vector<8x1xf32>
    %133 = math.rsqrt %132 : vector<8x1xf32>
    %134 = vector.broadcast %133 : vector<8x1xf32> to vector<8x256xf32>
    %135 = arith.mulf %128, %134 : vector<8x256xf32>
    %c0_36 = arith.constant 0 : index
    %c0_37 = arith.constant 0 : index
    %c0_38 = arith.constant 0 : index
    %136 = vector.load %arg7[%c0_36, %c0_37, %c0_38] : memref<1x8x256xf32, #tpu.memory_space<vmem>>, vector<1x8x256xf32>
    %137 = vector.shape_cast %136 : vector<1x8x256xf32> to vector<8x256xf32>
    %138 = vector.shape_cast %135 : vector<8x256xf32> to vector<1x8x256xf32>
    tpu.vector_store %arg7[%c0_36, %c0_37, %c0_38], %138 {strides = array<i32>} : memref<1x8x256xf32, #tpu.memory_space<vmem>>, vector<1x8x256xf32>,
    return
  }
  func.func @transform_0(%arg0: i32) -> (i32, i32, i32) {
    %c0_i32 = arith.constant 0 : i32
    %c0_i32_0 = arith.constant 0 : i32
    %c0_i32_1 = arith.constant 0 : i32
    return %arg0, %c0_i32, %c0_i32_0 : i32, i32, i32
  }
  func.func @transform_1(%arg0: i32) -> (i32, i32) {
    %c0_i32 = arith.constant 0 : i32
    %c0_i32_0 = arith.constant 0 : i32
    %c0_i32_1 = arith.constant 0 : i32
    return %c0_i32, %c0_i32_0 : i32, i32
  }
  func.func @transform_2(%arg0: i32) -> (i32, i32) {
    %c0_i32 = arith.constant 0 : i32
    %c0_i32_0 = arith.constant 0 : i32
    %c0_i32_1 = arith.constant 0 : i32
    return %c0_i32, %c0_i32_0 : i32, i32
  }
  func.func @transform_3(%arg0: i32) -> (i32, i32) {
    %c0_i32 = arith.constant 0 : i32
    %c0_i32_0 = arith.constant 0 : i32
    %c0_i32_1 = arith.constant 0 : i32
    return %c0_i32, %c0_i32_0 : i32, i32
  }
  func.func @transform_4(%arg0: i32) -> (i32, i32) {
    %c0_i32 = arith.constant 0 : i32
    %c0_i32_0 = arith.constant 0 : i32
    %c0_i32_1 = arith.constant 0 : i32
    return %c0_i32, %c0_i32_0 : i32, i32
  }
  func.func @transform_5(%arg0: i32) -> (i32, i32) {
    %c0_i32 = arith.constant 0 : i32
    %c0_i32_0 = arith.constant 0 : i32
    %c0_i32_1 = arith.constant 0 : i32
    return %c0_i32, %c0_i32_0 : i32, i32
  }
  func.func @transform_6(%arg0: i32) -> (i32, i32, i32) {
    %c0_i32 = arith.constant 0 : i32
    %c0_i32_0 = arith.constant 0 : i32
    %c0_i32_1 = arith.constant 0 : i32
    return %arg0, %c0_i32, %c0_i32_0 : i32, i32, i32
  }
}

</mosaic_0001>

<llo_original>
// kernel: tpu_custom_call.1
$region0: #{tpu_custom_call.1}
  #allocation0 [shape = 'u32[]', space=smem, size = 0x4, offset = 0x4, fixed_abs, tag = 'smem constant byte address 0x4 - core index']
  #allocation1 [shape = 'u32[72,128]{1,0:T(1,128)}', space=vmem, size = 0x9000, scoped, tag = 'internal scratch']
  %s0 = inlined_call_operand.hbm [shape: f32[2,16,256], index: 0, kind: input, shape index: {}]
  %s1 = inlined_call_operand.hbm [shape: f32[8,256], index: 1, kind: input, shape index: {}]
  %s2 = inlined_call_operand.hbm [shape: bf16[32,144], index: 2, kind: input, shape index: {}]
  %s3 = inlined_call_operand.vmem [shape: bf16[8,8], index: 3, kind: input, shape index: {}]
  %s4 = inlined_call_operand.vmem [shape: f32[8,1], index: 4, kind: input, shape index: {}]
  %s5 = inlined_call_operand.vmem [shape: bf16[8,72], index: 5, kind: input, shape index: {}]
  %s6 = inlined_call_operand.hbm [shape: f32[2,8,256], index: 6, kind: output, shape index: {}]
  %s7 = sld [smem:[#allocation0]]
  $region69: #{tpu_custom_call.1} parent=0
    _
  %s9 = ssub.s32 1, %s7
  %s10 = scalar_select 0, %s9, %s7
  $region1: #{tpu_custom_call.1} parent=0
    #allocation2 [shape = 'u8[32768]{0}', space=vmem, size = 0x8000, scoped, tag = 'input window, operand 0']
    #allocation3 [shape = 's32[2]{0}', space=sflag, size = 0x8, scoped, tag = 'scoped memory for tpu_custom_call.1']
    #allocation4 [shape = 's32[2]{0}', space=sflag, size = 0x8, scoped, tag = 'scoped memory for tpu_custom_call.1']
    #allocation5 [shape = 'u8[8192]{0}', space=vmem, size = 0x2000, scoped, tag = 'input window, operand 1, single buffered']
    #allocation6 [shape = 's32[1]{0}', space=sflag, size = 0x4, scoped, tag = 'scoped memory for tpu_custom_call.1']
    #allocation7 [shape = 'u8[16384]{0}', space=vmem, size = 0x4000, scoped, tag = 'input window, operand 2, single buffered']
    #allocation8 [shape = 'u8[16384]{0}', space=vmem, size = 0x4000, scoped, tag = 'output window, operand 0']
    %11 = vsyncpa [#allocation3], 0
    %s12 = scalar_lea.sflag [#allocation3], 1
    %13 = vsyncpa %s12, 0
    %14 = vsyncpa [#allocation6], 0
    %15 = vsyncpa [#allocation4], 0
    %s16 = scalar_lea.sflag [#allocation4], 1
    %17 = vsyncpa %s16, 0
    loop: start=0, step=1, limit=4
    $region2: #{tpu_custom_call.1} parent=1 // loop_pre_header
      _
    $region3: #{tpu_custom_call.1} parent=1 // loop_header
      %s19 = sphi 0, %s23
      %p20 = scmp.ge.s32.totalorder %s19, 4
      %s29 = sphi 0, %s31
      %s32 = sphi 0, %s29
      %s33 = sphi 0, %s32
      %s49 = sphi 0, %s33
      %s53 = sphi 0, %s53
      %s55 = sphi 0, %s53
      %s56 = sphi 0, %s55
      %s70 = sphi 0, %s56
      %s74 = sphi 0, %s74
      %s76 = sphi 0, %s74
      %s77 = sphi 0, %s76
      %s91 = sphi 0, %s77
      %s95 = sphi 0, %s95
      %s97 = sphi 0, %s95
      %s98 = sphi 0, %s97
      %s112 = sphi 0, %s98
      %s116 = sphi 0, %s116
      %s118 = sphi 0, %s116
      %s119 = sphi 0, %s118
      %s133 = sphi 0, %s119
      %s137 = sphi 0, %s137
      %s139 = sphi 0, %s137
      %s140 = sphi 0, %s139
      %s154 = sphi 0, %s140
      %s160 = sphi 0, %s162
      %s163 = sphi 0, %s160
      %s164 = sphi 0, %s163
      %s180 = sphi 0, %s164
    $region4: #{tpu_custom_call.1} parent=1 // loop_header_branch
      %22 = sbr.rel (%p20) target = $region8
    $region5: #{tpu_custom_call.1} parent=1 // loop_body
      %s24 = ssub.s32 %s19, 1
      %s25 = ssub.s32 %s19, 2
      %s26 = sadd.s32 %s19, 1
      %s27 = ssub.s32 %s19, %s26
      %p28 = scmp.eq.s32.totalorder %s27, 0
      %s30 = sadd.s32 %s29, 1
      %s31 = scalar_select %p28, %s29, %s30
      %p34 = pneg %p28
      %p35 = scmp.eq.s32.totalorder %s19, 1
      %p36 = por %p34, %p35
      %p37 = scmp.ne.s32.totalorder %s29, %s32
      %p38 = scmp.eq.s32.totalorder %s19, 0
      %p39 = por %p37, %p38
      %p40 = scmp.ne.s32.totalorder %s29, %s32
      %p41 = scmp.eq.s32.totalorder %s24, 1
      %p42 = por %p40, %p41
      %p43 = scmp.ne.s32.totalorder %s32, %s33
      %p44 = scmp.eq.s32.totalorder %s24, 0
      %p45 = por %p43, %p44
      %p46 = scmp.ne.s32.totalorder %s32, %s33
      %p47 = scmp.eq.s32.totalorder %s25, 1
      %p48 = por %p46, %p47
      %p50 = scmp.ne.s32.totalorder %s33, %s49
      %p51 = scmp.eq.s32.totalorder %s25, 0
      %p52 = por %p50, %p51
      %s54 = sadd.s32 %s53, 1
      %p57 = scmp.eq.s32.totalorder %s19, 1
      %p58 = scmp.ne.s32.totalorder %s53, %s55
      %p59 = scmp.eq.s32.totalorder %s19, 0
      %p60 = por %p58, %p59
      %p61 = scmp.ne.s32.totalorder %s53, %s55
      %p62 = scmp.eq.s32.totalorder %s24, 1
      %p63 = por %p61, %p62
      %p64 = scmp.ne.s32.totalorder %s55, %s56
      %p65 = scmp.eq.s32.totalorder %s24, 0
      %p66 = por %p64, %p65
      %p67 = scmp.ne.s32.totalorder %s55, %s56
      %p68 = scmp.eq.s32.totalorder %s25, 1
      %p69 = por %p67, %p68
      %p71 = scmp.ne.s32.totalorder %s56, %s70
      %p72 = scmp.eq.s32.totalorder %s25, 0
      %p73 = por %p71, %p72
      %s75 = sadd.s32 %s74, 1
      %p78 = scmp.eq.s32.totalorder %s19, 1
      %p79 = scmp.ne.s32.totalorder %s74, %s76
      %p80 = scmp.eq.s32.totalorder %s19, 0
      %p81 = por %p79, %p80
      %p82 = scmp.ne.s32.totalorder %s74, %s76
      %p83 = scmp.eq.s32.totalorder %s24, 1
      %p84 = por %p82, %p83
      %p85 = scmp.ne.s32.totalorder %s76, %s77
      %p86 = scmp.eq.s32.totalorder %s24, 0
      %p87 = por %p85, %p86
      %p88 = scmp.ne.s32.totalorder %s76, %s77
      %p89 = scmp.eq.s32.totalorder %s25, 1
      %p90 = por %p88, %p89
      %p92 = scmp.ne.s32.totalorder %s77, %s91
      %p93 = scmp.eq.s32.totalorder %s25, 0
      %p94 = por %p92, %p93
      %s96 = sadd.s32 %s95, 1
      %p99 = scmp.eq.s32.totalorder %s19, 1
      %p100 = scmp.ne.s32.totalorder %s95, %s97
      %p101 = scmp.eq.s32.totalorder %s19, 0
      %p102 = por %p100, %p101
      %p103 = scmp.ne.s32.totalorder %s95, %s97
      %p104 = scmp.eq.s32.totalorder %s24, 1
      %p105 = por %p103, %p104
      %p106 = scmp.ne.s32.totalorder %s97, %s98
      %p107 = scmp.eq.s32.totalorder %s24, 0
      %p108 = por %p106, %p107
      %p109 = scmp.ne.s32.totalorder %s97, %s98
      %p110 = scmp.eq.s32.totalorder %s25, 1
      %p111 = por %p109, %p110
      %p113 = scmp.ne.s32.totalorder %s98, %s112
      %p114 = scmp.eq.s32.totalorder %s25, 0
      %p115 = por %p113, %p114
      %s117 = sadd.s32 %s116, 1
      %p120 = scmp.eq.s32.totalorder %s19, 1
      %p121 = scmp.ne.s32.totalorder %s116, %s118
      %p122 = scmp.eq.s32.totalorder %s19, 0
      %p123 = por %p121, %p122
      %p124 = scmp.ne.s32.totalorder %s116, %s118
      %p125 = scmp.eq.s32.totalorder %s24, 1
      %p126 = por %p124, %p125
      %p127 = scmp.ne.s32.totalorder %s118, %s119
      %p128 = scmp.eq.s32.totalorder %s24, 0
      %p129 = por %p127, %p128
      %p130 = scmp.ne.s32.totalorder %s118, %s119
      %p131 = scmp.eq.s32.totalorder %s25, 1
      %p132 = por %p130, %p131
      %p134 = scmp.ne.s32.totalorder %s119, %s133
      %p135 = scmp.eq.s32.totalorder %s25, 0
      %p136 = por %p134, %p135
      %s138 = sadd.s32 %s137, 1
      %p141 = scmp.eq.s32.totalorder %s19, 1
      %p142 = scmp.ne.s32.totalorder %s137, %s139
      %p143 = scmp.eq.s32.totalorder %s19, 0
      %p144 = por %p142, %p143
      %p145 = scmp.ne.s32.totalorder %s137, %s139
      %p146 = scmp.eq.s32.totalorder %s24, 1
      %p147 = por %p145, %p146
      %p148 = scmp.ne.s32.totalorder %s139, %s140
      %p149 = scmp.eq.s32.totalorder %s24, 0
      %p150 = por %p148, %p149
      %p151 = scmp.ne.s32.totalorder %s139, %s140
      %p152 = scmp.eq.s32.totalorder %s25, 1
      %p153 = por %p151, %p152
      %p155 = scmp.ne.s32.totalorder %s140, %s154
      %p156 = scmp.eq.s32.totalorder %s25, 0
      %p157 = por %p155, %p156
      %s158 = ssub.s32 %s19, %s26
      %p159 = scmp.eq.s32.totalorder %s158, 0
      %s161 = sadd.s32 %s160, 1
      %s162 = scalar_select %p159, %s160, %s161
      %p165 = pneg %p159
      %p166 = scmp.eq.s32.totalorder %s19, 1
      %p167 = por %p165, %p166
      %p168 = scmp.ne.s32.totalorder %s160, %s163
      %p169 = scmp.eq.s32.totalorder %s19, 0
      %p170 = por %p168, %p169
      %p171 = scmp.ne.s32.totalorder %s160, %s163
      %p172 = scmp.eq.s32.totalorder %s24, 1
      %p173 = por %p171, %p172
      %p174 = scmp.ne.s32.totalorder %s163, %s164
      %p175 = scmp.eq.s32.totalorder %s24, 0
      %p176 = por %p174, %p175
      %p177 = scmp.ne.s32.totalorder %s163, %s164
      %p178 = scmp.eq.s32.totalorder %s25, 1
      %p179 = por %p177, %p178
      %p181 = scmp.ne.s32.totalorder %s164, %s180
      %p182 = scmp.eq.s32.totalorder %s25, 0
      %p183 = por %p181, %p182
      %p184 = scmp.le.s32.totalorder 1, %s19
      %p185 = scmp.lt.s32.totalorder %s19, 3
      %p186 = pnand %p184, %p185
      %p187 = pneg %p186
      // Predicated region
      $region9: #{tpu_custom_call.1} parent=5 // pred_check
        _
      $region10: #{tpu_custom_call.1} parent=5 // pred_check_branch
        %189 = sbr.rel (%p186) target = $region12
      $region11: #{tpu_custom_call.1} parent=5 // pred_region
        %s190 = ssub.s32 %s19, 1
        // Predicated region
        $region13: #{tpu_custom_call.1} parent=11 // pred_check
          %p191 = pneg %p66
        $region14: #{tpu_custom_call.1} parent=11 // pred_check_branch
          %193 = sbr.rel (%p191) target = $region16
        $region15: #{tpu_custom_call.1} parent=11 // pred_region
          %195 = vsyncadd [#allocation6], 0
          %s197 = sshll.u32 %s1, 4
          %s198 = int_to_ptr.hbm [resolvable:$true] %s197
          %s199 = sshll.u32 [#allocation5], 4
          %s200 = int_to_ptr.vmem [resolvable:$true] %s199
          %202 = dma.hbm_to_vmem [thread:$0]  %s198, 256, %s200, [#allocation6]
        $region16: #{tpu_custom_call.1} parent=11 // pred_fallthru
          _
        // Predicated region
        $region17: #{tpu_custom_call.1} parent=11 // pred_check
          %p203 = pneg %p87
        $region18: #{tpu_custom_call.1} parent=11 // pred_check_branch
          %205 = sbr.rel (%p203) target = $region20
        $region19: #{tpu_custom_call.1} parent=11 // pred_region
          %207 = vsyncadd [#allocation6], 0
          %s208 = sshll.u32 %s2, 4
          %s209 = int_to_ptr.hbm [resolvable:$true] %s208
          %s210 = sshll.u32 [#allocation7], 4
          %s211 = int_to_ptr.vmem [resolvable:$true] %s210
          %216 = dma.hbm_to_vmem [thread:$0]  %s209, 512, %s211, [#allocation6], 128, 128, 8
        $region20: #{tpu_custom_call.1} parent=11 // pred_fallthru
          _
        // Predicated region
        $region21: #{tpu_custom_call.1} parent=11 // pred_check
          %p217 = pneg %p108
        $region22: #{tpu_custom_call.1} parent=11 // pred_check_branch
          %219 = sbr.rel (%p217) target = $region24
        $region23: #{tpu_custom_call.1} parent=11 // pred_region
          _
        $region24: #{tpu_custom_call.1} parent=11 // pred_fallthru
          _
        // Predicated region
        $region25: #{tpu_custom_call.1} parent=11 // pred_check
          %p220 = pneg %p129
        $region26: #{tpu_custom_call.1} parent=11 // pred_check_branch
          %222 = sbr.rel (%p220) target = $region28
        $region27: #{tpu_custom_call.1} parent=11 // pred_region
          _
        $region28: #{tpu_custom_call.1} parent=11 // pred_fallthru
          _
        // Predicated region
        $region29: #{tpu_custom_call.1} parent=11 // pred_check
          %p223 = pneg %p150
        $region30: #{tpu_custom_call.1} parent=11 // pred_check_branch
          %225 = sbr.rel (%p223) target = $region32
        $region31: #{tpu_custom_call.1} parent=11 // pred_region
          _
        $region32: #{tpu_custom_call.1} parent=11 // pred_fallthru
          _
      $region12: #{tpu_custom_call.1} parent=5 // pred_fallthru
        _
      %p226 = scmp.lt.s32.totalorder %s19, 2
      // Predicated region
      $region33: #{tpu_custom_call.1} parent=5 // pred_check
        %p227 = pneg %p226
      $region34: #{tpu_custom_call.1} parent=5 // pred_check_branch
        %229 = sbr.rel (%p227) target = $region36
      $region35: #{tpu_custom_call.1} parent=5 // pred_region
        // Predicated region
        $region37: #{tpu_custom_call.1} parent=35 // pred_check
          %p230 = pneg %p39
        $region38: #{tpu_custom_call.1} parent=35 // pred_check_branch
          %232 = sbr.rel (%p230) target = $region40
        $region39: #{tpu_custom_call.1} parent=35 // pred_region
          %s233 = sand.u32 %s29, 1
          %s234 = scalar_lea.sflag [#allocation3], %s233
          %s235 = sand.u32 %s29, 1
          %s236 = smul.addr %s235, 32
          %s237 = scalar_lea.vmem [#allocation2], %s236
          %239 = vsyncadd %s234, 0
          %s240 = smul.addr %s19, 4
          %s241 = smul.addr %s240, 8
          %s242 = scalar_lea.hbm %s0, %s241
          %s243 = sshll.u32 %s242, 4
          %s244 = int_to_ptr.hbm [resolvable:$true] %s243
          %s245 = sshll.u32 %s237, 4
          %s246 = int_to_ptr.vmem [resolvable:$true] %s245
          %251 = dma.hbm_to_vmem [thread:$0]  %s244, 512, %s246, %s234, 256, 256, 16
        $region40: #{tpu_custom_call.1} parent=35 // pred_fallthru
          _
      $region36: #{tpu_custom_call.1} parent=5 // pred_fallthru
        _
      %p252 = scmp.le.s32.totalorder 1, %s19
      %p253 = scmp.lt.s32.totalorder %s19, 3
      %p254 = pnand %p252, %p253
      %p255 = pneg %p254
      // Predicated region
      $region41: #{tpu_custom_call.1} parent=5 // pred_check
        _
      $region42: #{tpu_custom_call.1} parent=5 // pred_check_branch
        %257 = sbr.rel (%p254) target = $region44
      $region43: #{tpu_custom_call.1} parent=5 // pred_region
        %s258 = ssub.s32 %s19, 1
        %s259 = sand.u32 %s32, 1
        %s260 = scalar_lea.sflag [#allocation3], %s259
        %s261 = sand.u32 %s32, 1
        %s262 = smul.addr %s261, 32
        %s263 = scalar_lea.vmem [#allocation2], %s262
        // Predicated region
        $region45: #{tpu_custom_call.1} parent=43 // pred_check
          %p264 = pneg %p45
        $region46: #{tpu_custom_call.1} parent=43 // pred_check_branch
          %266 = sbr.rel (%p264) target = $region48
        $region47: #{tpu_custom_call.1} parent=43 // pred_region
          %268 = dma.done %s260, 512
        $region48: #{tpu_custom_call.1} parent=43 // pred_fallthru
          _
        // Predicated region
        $region49: #{tpu_custom_call.1} parent=43 // pred_check
          %p269 = pneg %p66
        $region50: #{tpu_custom_call.1} parent=43 // pred_check_branch
          %271 = sbr.rel (%p269) target = $region52
        $region51: #{tpu_custom_call.1} parent=43 // pred_region
          %273 = dma.done [#allocation6], 256
        $region52: #{tpu_custom_call.1} parent=43 // pred_fallthru
          _
        // Predicated region
        $region53: #{tpu_custom_call.1} parent=43 // pred_check
          %p274 = pneg %p87
        $region54: #{tpu_custom_call.1} parent=43 // pred_check_branch
          %276 = sbr.rel (%p274) target = $region56
        $region55: #{tpu_custom_call.1} parent=43 // pred_region
          %278 = dma.done [#allocation6], 512
        $region56: #{tpu_custom_call.1} parent=43 // pred_fallthru
          _
        %s279 = sand.u32 %s32, 1
        %s280 = scalar_lea.sflag [#allocation3], %s279
        %s281 = sand.u32 %s32, 1
        %s282 = smul.addr %s281, 32
        %s283 = scalar_lea.vmem [#allocation2], %s282
        %p284 = pneg %p45
        %p285 = pneg %p42
        %p286 = pneg %p66
        %p287 = pneg %p63
        %p288 = pneg %p87
        %p289 = pneg %p84
        %p290 = pneg %p108
        %p291 = pneg %p105
        %p292 = pneg %p129
        %p293 = pneg %p126
        %p294 = pneg %p150
        %p295 = pneg %p147
        %p296 = pneg %p176
        %p297 = pneg %p173
        %s298 = sand.u32 %s163, 1
        %s299 = scalar_lea.sflag [#allocation4], %s298
        %s300 = sand.u32 %s163, 1
        %s301 = smul.addr %s300, 16
        %s302 = scalar_lea.vmem [#allocation8], %s301
        %v304 = vld [vmem:[#allocation5] sm:$0xff]
        %v305 = vld [vmem:[#allocation5 + $0x8] sm:$0xff]
        %v306 = vld [vmem:[#allocation7] sm:$0xff]
        %v307 = vld [vmem:[#allocation7 + $0x8] sm:$0xff]
        %v308 = vld [vmem:[#allocation7 + $0x10] sm:$0xff]
        %v309 = vld [vmem:[#allocation7 + $0x18] sm:$0xff]
        %v310 = vld [vmem:[%s3] sm:$0xf]
        %v311 = vld [vmem:[%s4] sm:$0xff]
        %v312 = vld [vmem:[%s5] sm:$0xf]
        %v313 = vld [vmem:[%s263] sm:$0xff]
        %v314 = vld [vmem:[%s263 + $0x8] sm:$0xff]
        %v315 = vld [vmem:[%s263 + $0x10] sm:$0xff]
        %v316 = vld [vmem:[%s263 + $0x18] sm:$0xff]
        %317 = vrot.lane.b32.xlu0 %v313, 17
        %v318 = vpop.permute.xlu0 %317
        %319 = vrot.lane.b32.xlu0 %v315, 17
        %v320 = vpop.permute.xlu0 %319
        %321 = vrot.lane.b32.xlu0 %v314, 17
        %v322 = vpop.permute.xlu0 %321
        %323 = vrot.lane.b32.xlu0 %v316, 17
        %v324 = vpop.permute.xlu0 %323
        %v325 = vlaneseq
        %v326 = vand.u32 %v325, 127
        %vm327 = vcmp.lt.s32.totalorder %v326, 17
        %v328 = vsel %vm327, %v318, %v322
        %v329 = vsel %vm327, %v320, %v324
        %v330 = vsel %vm327, %v322, %v318
        %v331 = vsel %vm327, %v324, %v320
        %v332 = vperm.slane %v304, 0
        %v333 = vperm.slane %v305, 0
        %v334 = vmul.f32 %v330, %v332
        %v335 = vmul.f32 %v328, %v333
        %v336 = vmul.f32 %v331, %v332
        %v337 = vmul.f32 %v329, %v333
        %338 = vrot.lane.b32.xlu0 %v313, 16
        %v339 = vpop.permute.xlu0 %338
        %340 = vrot.lane.b32.xlu0 %v315, 16
        %v341 = vpop.permute.xlu0 %340
        %342 = vrot.lane.b32.xlu0 %v314, 16
        %v343 = vpop.permute.xlu0 %342
        %344 = vrot.lane.b32.xlu0 %v316, 16
        %v345 = vpop.permute.xlu0 %344
        %vm346 = vcmp.lt.s32.totalorder %v326, 16
        %v347 = vsel %vm346, %v339, %v343
        %v348 = vsel %vm346, %v341, %v345
        %v349 = vsel %vm346, %v343, %v339
        %v350 = vsel %vm346, %v345, %v341
        %v351 = vperm.slane %v304, 1
        %v352 = vperm.slane %v305, 1
        %v353 = vmul.f32 %v349, %v351
        %v354 = vmul.f32 %v347, %v352
        %v355 = vmul.f32 %v350, %v351
        %v356 = vmul.f32 %v348, %v352
        %357 = vrot.lane.b32.xlu0 %v313, 15
        %v358 = vpop.permute.xlu0 %357
        %359 = vrot.lane.b32.xlu0 %v315, 15
        %v360 = vpop.permute.xlu0 %359
        %361 = vrot.lane.b32.xlu0 %v314, 15
        %v362 = vpop.permute.xlu0 %361
        %363 = vrot.lane.b32.xlu0 %v316, 15
        %v364 = vpop.permute.xlu0 %363
        %vm365 = vcmp.lt.s32.totalorder %v326, 15
        %v366 = vsel %vm365, %v358, %v362
        %v367 = vsel %vm365, %v360, %v364
        %v368 = vsel %vm365, %v362, %v358
        %v369 = vsel %vm365, %v364, %v360
        %v370 = vperm.slane %v304, 2
        %v371 = vperm.slane %v305, 2
        %v372 = vmul.f32 %v368, %v370
        %v373 = vmul.f32 %v366, %v371
        %v374 = vmul.f32 %v369, %v370
        %v375 = vmul.f32 %v367, %v371
        %376 = vrot.lane.b32.xlu0 %v313, 1
        %v377 = vpop.permute.xlu0 %376
        %378 = vrot.lane.b32.xlu0 %v315, 1
        %v379 = vpop.permute.xlu0 %378
        %380 = vrot.lane.b32.xlu0 %v314, 1
        %v381 = vpop.permute.xlu0 %380
        %382 = vrot.lane.b32.xlu0 %v316, 1
        %v383 = vpop.permute.xlu0 %382
        %vm384 = vcmp.lt.s32.totalorder %v326, 1
        %v385 = vsel %vm384, %v377, %v381
        %v386 = vsel %vm384, %v379, %v383
        %v387 = vsel %vm384, %v381, %v377
        %v388 = vsel %vm384, %v383, %v379
        %v389 = vperm.slane %v304, 3
        %v390 = vperm.slane %v305, 3
        %v391 = vmul.f32 %v387, %v389
        %v392 = vmul.f32 %v385, %v390
        %v393 = vmul.f32 %v388, %v389
        %v394 = vmul.f32 %v386, %v390
        %395 = vrot.lane.b32.xlu0 %v313, 127
        %v396 = vpop.permute.xlu0 %395
        %397 = vrot.lane.b32.xlu0 %v315, 127
        %v398 = vpop.permute.xlu0 %397
        %399 = vrot.lane.b32.xlu0 %v314, 127
        %v400 = vpop.permute.xlu0 %399
        %401 = vrot.lane.b32.xlu0 %v316, 127
        %v402 = vpop.permute.xlu0 %401
        %vm403 = vcmp.lt.s32.totalorder %v326, 127
        %v404 = vsel %vm403, %v396, %v400
        %v405 = vsel %vm403, %v398, %v402
        %v406 = vsel %vm403, %v400, %v396
        %v407 = vsel %vm403, %v402, %v398
        %v408 = vperm.slane %v304, 4
        %v409 = vperm.slane %v305, 4
        %v410 = vmul.f32 %v404, %v408
        %v411 = vmul.f32 %v406, %v409
        %v412 = vmul.f32 %v405, %v408
        %v413 = vmul.f32 %v407, %v409
        %414 = vrot.lane.b32.xlu0 %v313, 113
        %v415 = vpop.permute.xlu0 %414
        %416 = vrot.lane.b32.xlu0 %v315, 113
        %v417 = vpop.permute.xlu0 %416
        %418 = vrot.lane.b32.xlu0 %v314, 113
        %v419 = vpop.permute.xlu0 %418
        %420 = vrot.lane.b32.xlu0 %v316, 113
        %v421 = vpop.permute.xlu0 %420
        %vm422 = vcmp.lt.s32.totalorder %v326, 113
        %v423 = vsel %vm422, %v415, %v419
        %v424 = vsel %vm422, %v417, %v421
        %v425 = vsel %vm422, %v419, %v415
        %v426 = vsel %vm422, %v421, %v417
        %v427 = vperm.slane %v304, 5
        %v428 = vperm.slane %v305, 5
        %v429 = vmul.f32 %v423, %v427
        %v430 = vmul.f32 %v425, %v428
        %v431 = vmul.f32 %v424, %v427
        %v432 = vmul.f32 %v426, %v428
        %433 = vrot.lane.b32.xlu0 %v313, 112
        %v434 = vpop.permute.xlu0 %433
        %435 = vrot.lane.b32.xlu0 %v315, 112
        %v436 = vpop.permute.xlu0 %435
        %437 = vrot.lane.b32.xlu0 %v314, 112
        %v438 = vpop.permute.xlu0 %437
        %439 = vrot.lane.b32.xlu0 %v316, 112
        %v440 = vpop.permute.xlu0 %439
        %vm441 = vcmp.lt.s32.totalorder %v326, 112
        %v442 = vsel %vm441, %v434, %v438
        %v443 = vsel %vm441, %v436, %v440
        %v444 = vsel %vm441, %v438, %v434
        %v445 = vsel %vm441, %v440, %v436
        %v446 = vperm.slane %v304, 6
        %v447 = vperm.slane %v305, 6
        %v448 = vmul.f32 %v442, %v446
        %v449 = vmul.f32 %v444, %v447
        %v450 = vmul.f32 %v443, %v446
        %v451 = vmul.f32 %v445, %v447
        %452 = vrot.lane.b32.xlu0 %v313, 111
        %v453 = vpop.permute.xlu0 %452
        %454 = vrot.lane.b32.xlu0 %v315, 111
        %v455 = vpop.permute.xlu0 %454
        %456 = vrot.lane.b32.xlu0 %v314, 111
        %v457 = vpop.permute.xlu0 %456
        %458 = vrot.lane.b32.xlu0 %v316, 111
        %v459 = vpop.permute.xlu0 %458
        %vm460 = vcmp.lt.s32.totalorder %v326, 111
        %v461 = vsel %vm460, %v453, %v457
        %v462 = vsel %vm460, %v455, %v459
        %v463 = vsel %vm460, %v457, %v453
        %v464 = vsel %vm460, %v459, %v455
        %v465 = vperm.slane %v304, 7
        %v466 = vperm.slane %v305, 7
        %v467 = vmul.f32 %v461, %v465
        %v468 = vmul.f32 %v463, %v466
        %v469 = vmul.f32 %v462, %v465
        %v470 = vmul.f32 %v464, %v466
        %v471 = vpack.c.bf16 %v336, %v334
        %v472 = vpack.c.bf16 %v337, %v335
        %v473 = vpack.c.bf16 %v355, %v353
        %v474 = vpack.c.bf16 %v356, %v354
        %v475 = vpack.c.bf16 %v374, %v372
        %v476 = vpack.c.bf16 %v375, %v373
        %v477 = vpack.c.bf16 %v393, %v391
        %v478 = vpack.c.bf16 %v394, %v392
        %v479 = vpack.c.bf16 %v315, %v313
        %v480 = vpack.c.bf16 %v316, %v314
        %v481 = vpack.c.bf16 %v412, %v410
        %v482 = vpack.c.bf16 %v413, %v411
        %v483 = vpack.c.bf16 %v431, %v429
        %v484 = vpack.c.bf16 %v432, %v430
        %v485 = vpack.c.bf16 %v450, %v448
        %v486 = vpack.c.bf16 %v451, %v449
        %v487 = vpack.c.bf16 %v469, %v467
        %v488 = vpack.c.bf16 %v470, %v468
        %v493 = vunpack.c.l.b16 %v306
        %v494 = vunpack.c.h.b16 %v306
        %v495 = vunpack.c.l.b16 %v307
        %v496 = vunpack.c.h.b16 %v307
        %v497 = vunpack.c.l.b16 %v308
        %v498 = vunpack.c.h.b16 %v308
        %v499 = vunpack.c.l.b16 %v309
        %v500 = vunpack.c.h.b16 %v309
        %v501 = vpack.c.b16 %v495, %v493
        %v502 = vpack.c.b16 %v496, %v494
        %v503 = vpack.c.b16 %v499, %v497
        %v504 = vpack.c.b16 %v500, %v498
        %vm507 = vcmask 130048
        %v509 = vsel %vm507, %v502, 0
        %v512 = vsel %vm507, %v504, 0
        %514 = vmatpush.bf16.msra.mxu0 %v485
        %515 = vmatpush.bf16.msra.mxu0 %v483
        %516 = vmatpush.bf16.msra.mxu0 %v481
        %517 = vmatpush.bf16.msra.mxu0 %v479
        %518 = vmatpush.bf16.msra.mxu0 %v477
        %519 = vmatpush.bf16.msra.mxu0 %v475
        %520 = vmatpush.bf16.msra.mxu0 %v473
        %521 = vmatpush.bf16.msra.mxu0 %v471
        %522 = vmatmul.bf16.gmra.mxu0 %v501
        %v523 = vpop.f32.mrf.mxu0
        %v524 = vadd.f32 0.0, %v523
        %v525 = vpop.f32.mrf.mxu0
        %v526 = vadd.f32 0.0, %v525
        %527 = vmatmul.bf16.gmra.mxu0 %v503
        %v528 = vpop.f32.mrf.mxu0
        %v529 = vadd.f32 0.0, %v528
        %v530 = vpop.f32.mrf.mxu0
        %v531 = vadd.f32 0.0, %v530
        %532 = vdwg.mxu0
        %533 = vmatpush.bf16.msra.mxu0 0
        %534 = vmatpush.bf16.msra.mxu0 0
        %535 = vmatpush.bf16.msra.mxu0 0
        %536 = vmatpush.bf16.msra.mxu0 0
        %537 = vmatpush.bf16.msra.mxu0 0
        %538 = vmatpush.bf16.msra.mxu0 0
        %539 = vmatpush.bf16.msra.mxu0 0
        %540 = vmatpush.bf16.msra.mxu0 %v487
        %541 = vmatmul.bf16.gmra.mxu0 %v509
        %v542 = vpop.f32.mrf.mxu0
        %v543 = vadd.f32 %v524, %v542
        %v544 = vpop.f32.mrf.mxu0
        %v545 = vadd.f32 %v526, %v544
        %546 = vmatmul.bf16.gmra.mxu0 %v512
        %v547 = vpop.f32.mrf.mxu0
        %v548 = vadd.f32 %v529, %v547
        %v549 = vpop.f32.mrf.mxu0
        %v550 = vadd.f32 %v531, %v549
        %551 = vdwg.mxu0
        %552 = vmatpush.bf16.msra.mxu0 %v486
        %553 = vmatpush.bf16.msra.mxu0 %v484
        %554 = vmatpush.bf16.msra.mxu0 %v482
        %555 = vmatpush.bf16.msra.mxu0 %v480
        %556 = vmatpush.bf16.msra.mxu0 %v478
        %557 = vmatpush.bf16.msra.mxu0 %v476
        %558 = vmatpush.bf16.msra.mxu0 %v474
        %559 = vmatpush.bf16.msra.mxu0 %v472
        %560 = vmatmul.bf16.gmra.mxu0 %v501
        %v561 = vpop.f32.mrf.mxu0
        %v562 = vadd.f32 0.0, %v561
        %v563 = vpop.f32.mrf.mxu0
        %v564 = vadd.f32 0.0, %v563
        %565 = vmatmul.bf16.gmra.mxu0 %v503
        %v566 = vpop.f32.mrf.mxu0
        %v567 = vadd.f32 0.0, %v566
        %v568 = vpop.f32.mrf.mxu0
        %v569 = vadd.f32 0.0, %v568
        %570 = vdwg.mxu0
        %571 = vmatpush.bf16.msra.mxu0 0
        %572 = vmatpush.bf16.msra.mxu0 0
        %573 = vmatpush.bf16.msra.mxu0 0
        %574 = vmatpush.bf16.msra.mxu0 0
        %575 = vmatpush.bf16.msra.mxu0 0
        %576 = vmatpush.bf16.msra.mxu0 0
        %577 = vmatpush.bf16.msra.mxu0 0
        %578 = vmatpush.bf16.msra.mxu0 %v488
        %579 = vmatmul.bf16.gmra.mxu0 %v509
        %v580 = vpop.f32.mrf.mxu0
        %v581 = vadd.f32 %v562, %v580
        %v582 = vpop.f32.mrf.mxu0
        %v583 = vadd.f32 %v564, %v582
        %584 = vmatmul.bf16.gmra.mxu0 %v512
        %v585 = vpop.f32.mrf.mxu0
        %v586 = vadd.f32 %v567, %v585
        %v587 = vpop.f32.mrf.mxu0
        %v588 = vadd.f32 %v569, %v587
        %589 = vdwg.mxu0
        %v590 = vadd.f32 %v543, %v581
        %591 = vadd.xlane.f32.xlu0 %v590
        %v592 = vpop.xlane.xlu0 %591
        %v593 = vadd.f32 %v545, %v583
        %594 = vadd.xlane.f32.xlu0 %v593
        %v595 = vpop.xlane.xlu0 %594
        %v596 = vadd.f32 %v548, %v586
        %597 = vadd.xlane.f32.xlu0 %v596
        %v598 = vpop.xlane.xlu0 %597
        %v599 = vadd.f32 %v550, %v588
        %600 = vadd.xlane.f32.xlu0 %v599
        %v601 = vpop.xlane.xlu0 %600
        %v602 = vrcp.pop 256.0
        %v603 = vmul.f32 256.0, %v602
        %v604 = vsub.f32 1.0, %v603
        %v605 = vmul.f32 %v602, %v604
        %v606 = vadd.f32 %v602, %v605
        %vm607 = vweird.f32 %v602
        %v608 = vsel %vm607, %v602, %v606
        %v609 = vmul.f32 %v592, %v608
        %v610 = vmul.f32 %v595, %v608
        %v611 = vmul.f32 %v598, %v608
        %v612 = vmul.f32 %v601, %v608
        %v613 = vmul.f32 %v543, %v543
        %v614 = vmul.f32 %v581, %v581
        %v615 = vmul.f32 %v545, %v545
        %v616 = vmul.f32 %v583, %v583
        %v617 = vmul.f32 %v548, %v548
        %v618 = vmul.f32 %v586, %v586
        %v619 = vmul.f32 %v550, %v550
        %v620 = vmul.f32 %v588, %v588
        %v621 = vadd.f32 %v613, %v614
        %622 = vadd.xlane.f32.xlu0 %v621
        %v623 = vpop.xlane.xlu0 %622
        %v624 = vadd.f32 %v615, %v616
        %625 = vadd.xlane.f32.xlu0 %v624
        %v626 = vpop.xlane.xlu0 %625
        %v627 = vadd.f32 %v617, %v618
        %628 = vadd.xlane.f32.xlu0 %v627
        %v629 = vpop.xlane.xlu0 %628
        %v630 = vadd.f32 %v619, %v620
        %631 = vadd.xlane.f32.xlu0 %v630
        %v632 = vpop.xlane.xlu0 %631
        %v633 = vmul.f32 %v623, %v608
        %v634 = vmul.f32 %v626, %v608
        %v635 = vmul.f32 %v629, %v608
        %v636 = vmul.f32 %v632, %v608
        %v637 = vsub.f32 %v543, %v609
        %v638 = vsub.f32 %v581, %v609
        %v639 = vsub.f32 %v545, %v610
        %v640 = vsub.f32 %v583, %v610
        %v641 = vsub.f32 %v548, %v611
        %v642 = vsub.f32 %v586, %v611
        %v643 = vsub.f32 %v550, %v612
        %v644 = vsub.f32 %v588, %v612
        %v645 = vmul.f32 %v609, %v609
        %v646 = vmul.f32 %v610, %v610
        %v647 = vmul.f32 %v611, %v611
        %v648 = vmul.f32 %v612, %v612
        %v649 = vsub.f32 %v633, %v645
        %v650 = vsub.f32 %v634, %v646
        %v651 = vsub.f32 %v635, %v647
        %v652 = vsub.f32 %v636, %v648
        %v653 = vadd.f32 %v649, 1e-05
        %v654 = vadd.f32 %v650, 1e-05
        %v655 = vadd.f32 %v651, 1e-05
        %v656 = vadd.f32 %v652, 1e-05
        %v657 = vrsqrt.pop %v653
        %v658 = vmul.f32 %v657, %v653
        %v659 = vmul.f32 %v658, %v657
        %v660 = vmul.f32 0.5, %v659
        %v661 = vsub.f32 1.5, %v660
        %v662 = vmul.f32 %v657, %v661
        %vm663 = vweird.f32 %v653
        %vm664 = vweird.f32 %v657
        %vm665 = vmor %vm663, %vm664
        %v666 = vsel %vm665, %v657, %v662
        %v667 = vrsqrt.pop %v654
        %v668 = vmul.f32 %v667, %v654
        %v669 = vmul.f32 %v668, %v667
        %v670 = vmul.f32 0.5, %v669
        %v671 = vsub.f32 1.5, %v670
        %v672 = vmul.f32 %v667, %v671
        %vm673 = vweird.f32 %v654
        %vm674 = vweird.f32 %v667
        %vm675 = vmor %vm673, %vm674
        %v676 = vsel %vm675, %v667, %v672
        %v677 = vrsqrt.pop %v655
        %v678 = vmul.f32 %v677, %v655
        %v679 = vmul.f32 %v678, %v677
        %v680 = vmul.f32 0.5, %v679
        %v681 = vsub.f32 1.5, %v680
        %v682 = vmul.f32 %v677, %v681
        %vm683 = vweird.f32 %v655
        %vm684 = vweird.f32 %v677
        %vm685 = vmor %vm683, %vm684
        %v686 = vsel %vm685, %v677, %v682
        %v687 = vrsqrt.pop %v656
        %v688 = vmul.f32 %v687, %v656
        %v689 = vmul.f32 %v688, %v687
        %v690 = vmul.f32 0.5, %v689
        %v691 = vsub.f32 1.5, %v690
        %v692 = vmul.f32 %v687, %v691
        %vm693 = vweird.f32 %v656
        %vm694 = vweird.f32 %v687
        %vm695 = vmor %vm693, %vm694
        %v696 = vsel %vm695, %v687, %v692
        %v697 = vmul.f32 %v637, %v666
        %v698 = vmul.f32 %v638, %v666
        %v699 = vmul.f32 %v639, %v676
        %v700 = vmul.f32 %v640, %v676
        %v701 = vmul.f32 %v641, %v686
        %v702 = vmul.f32 %v642, %v686
        %v703 = vmul.f32 %v643, %v696
        %v704 = vmul.f32 %v644, %v696
        %v705 = vsub.f32 0.0, %v699
        %v706 = vsub.f32 0.0, %v700
        %v707 = vmul.f32 %v705, 1.442695
        %v708 = vpow.pop %v707
        %v709 = vmul.f32 %v706, 1.442695
        %v710 = vpow.pop %v709
        %v711 = vadd.f32 %v708, 1.0
        %v712 = vadd.f32 %v710, 1.0
        %v713 = vrcp.pop %v711
        %v714 = vrcp.pop %v712
        %v715 = vpack.c.bf16 %v703, %v703
        %v716 = vpack.c.bf16 %v704, %v704
        %718 = vset.pattern.permute.xlu0 0
        %719 = vperm.xlu0 %718, %v311
        %v720 = vpop.permute.xlu0 %719
        %vm722 = vcmask 64512
        %v724 = vsel %vm722, %v310, 0
        %vm726 = vcmask 1043456
        %v728 = vsel %vm726, %v715, 0
        %v731 = vsel %vm726, %v716, 0
        %733 = vmatpush.bf16.msra.mxu0 0
        %734 = vmatpush.bf16.msra.mxu0 0
        %735 = vmatpush.bf16.msra.mxu0 0
        %736 = vmatpush.bf16.msra.mxu0 0
        %737 = vmatpush.bf16.msra.mxu0 0
        %738 = vmatpush.bf16.msra.mxu0 0
        %739 = vmatpush.bf16.msra.mxu0 0
        %740 = vmatpush.bf16.msra.mxu0 %v728
        %741 = vmatmul.bf16.gmra.mxu0 %v724
        %v742 = vpop.f32.mrf.mxu0
        %v743 = vadd.f32 %v720, %v742
        %v744 = vpop.f32.mrf.mxu0
        %745 = vdwg.mxu0
        %746 = vmatpush.bf16.msra.mxu0 0
        %747 = vmatpush.bf16.msra.mxu0 0
        %748 = vmatpush.bf16.msra.mxu0 0
        %749 = vmatpush.bf16.msra.mxu0 0
        %750 = vmatpush.bf16.msra.mxu0 0
        %751 = vmatpush.bf16.msra.mxu0 0
        %752 = vmatpush.bf16.msra.mxu0 0
        %753 = vmatpush.bf16.msra.mxu0 %v731
        %754 = vmatmul.bf16.gmra.mxu0 %v724
        %v755 = vpop.f32.mrf.mxu0
        %v756 = vadd.f32 %v720, %v755
        %v757 = vpop.f32.mrf.mxu0
        %758 = vdwg.mxu0
        %v759 = vsub.f32 0.0, %v743
        %v760 = vsub.f32 0.0, %v756
        %v761 = vmul.f32 %v759, 1.442695
        %v762 = vpow.pop %v761
        %v763 = vmul.f32 %v760, 1.442695
        %v764 = vpow.pop %v763
        %v765 = vadd.f32 %v762, 1.0
        %v766 = vadd.f32 %v764, 1.0
        %v767 = vrcp.pop %v765
        %v768 = vrcp.pop %v766
        %v769 = vmul.f32 %v767, %v697
        %v770 = vmul.f32 %v768, %v698
        %v771 = vmul.f32 %v701, %v713
        %v772 = vmul.f32 %v702, %v714
        %v773 = vadd.f32 %v769, %v771
        %v774 = vadd.f32 %v770, %v772
        %775 = vrot.lane.b32.xlu0 %v773, 17
        %v776 = vpop.permute.xlu0 %775
        %777 = vrot.lane.b32.xlu0 %v774, 17
        %v778 = vpop.permute.xlu0 %777
        %v779 = vsel %vm327, %v776, %v778
        %v780 = vsel %vm327, %v778, %v776
        %v781 = vmul.f32 %v780, %v332
        %v782 = vmul.f32 %v779, %v333
        %783 = vrot.lane.b32.xlu0 %v773, 16
        %v784 = vpop.permute.xlu0 %783
        %785 = vrot.lane.b32.xlu0 %v774, 16
        %v786 = vpop.permute.xlu0 %785
        %v787 = vsel %vm346, %v784, %v786
        %v788 = vsel %vm346, %v786, %v784
        %v789 = vmul.f32 %v788, %v351
        %v790 = vmul.f32 %v787, %v352
        %791 = vrot.lane.b32.xlu0 %v773, 15
        %v792 = vpop.permute.xlu0 %791
        %793 = vrot.lane.b32.xlu0 %v774, 15
        %v794 = vpop.permute.xlu0 %793
        %v795 = vsel %vm365, %v792, %v794
        %v796 = vsel %vm365, %v794, %v792
        %v797 = vmul.f32 %v796, %v370
        %v798 = vmul.f32 %v795, %v371
        %799 = vrot.lane.b32.xlu0 %v773, 1
        %v800 = vpop.permute.xlu0 %799
        %801 = vrot.lane.b32.xlu0 %v774, 1
        %v802 = vpop.permute.xlu0 %801
        %v803 = vsel %vm384, %v800, %v802
        %v804 = vsel %vm384, %v802, %v800
        %v805 = vmul.f32 %v804, %v389
        %v806 = vmul.f32 %v803, %v390
        %807 = vrot.lane.b32.xlu0 %v773, 127
        %v808 = vpop.permute.xlu0 %807
        %809 = vrot.lane.b32.xlu0 %v774, 127
        %v810 = vpop.permute.xlu0 %809
        %v811 = vsel %vm403, %v808, %v810
        %v812 = vsel %vm403, %v810, %v808
        %v813 = vmul.f32 %v811, %v408
        %v814 = vmul.f32 %v812, %v409
        %815 = vrot.lane.b32.xlu0 %v773, 113
        %v816 = vpop.permute.xlu0 %815
        %817 = vrot.lane.b32.xlu0 %v774, 113
        %v818 = vpop.permute.xlu0 %817
        %v819 = vsel %vm422, %v816, %v818
        %v820 = vsel %vm422, %v818, %v816
        %v821 = vmul.f32 %v819, %v427
        %v822 = vmul.f32 %v820, %v428
        %823 = vrot.lane.b32.xlu0 %v773, 112
        %v824 = vpop.permute.xlu0 %823
        %825 = vrot.lane.b32.xlu0 %v774, 112
        %v826 = vpop.permute.xlu0 %825
        %v827 = vsel %vm441, %v824, %v826
        %v828 = vsel %vm441, %v826, %v824
        %v829 = vmul.f32 %v827, %v446
        %v830 = vmul.f32 %v828, %v447
        %831 = vrot.lane.b32.xlu0 %v773, 111
        %v832 = vpop.permute.xlu0 %831
        %833 = vrot.lane.b32.xlu0 %v774, 111
        %v834 = vpop.permute.xlu0 %833
        %v835 = vsel %vm460, %v832, %v834
        %v836 = vsel %vm460, %v834, %v832
        %v837 = vmul.f32 %v835, %v465
        %v838 = vmul.f32 %v836, %v466
        %v839 = vpack.c.bf16 %v789, %v781
        %v840 = vpack.c.bf16 %v790, %v782
        %v841 = vpack.c.bf16 %v805, %v797
        %v842 = vpack.c.bf16 %v806, %v798
        %v843 = vpack.c.bf16 %v813, %v773
        %v844 = vpack.c.bf16 %v814, %v774
        %v845 = vpack.c.bf16 %v829, %v821
        %v846 = vpack.c.bf16 %v830, %v822
        %v847 = vpack.c.bf16 %v837, %v837
        %v848 = vpack.c.bf16 %v838, %v838
        %vm849 = vcmask 588800
        %v851 = vsel %vm849, %v312, 0
        %v854 = vsel %vm726, %v847, 0
        %v857 = vsel %vm726, %v848, 0
        %859 = vmatpush.bf16.msra.mxu0 0
        %860 = vmatpush.bf16.msra.mxu0 0
        %861 = vmatpush.bf16.msra.mxu0 0
        %862 = vmatpush.bf16.msra.mxu0 %v854
        %863 = vmatpush.bf16.msra.mxu0 %v845
        %864 = vmatpush.bf16.msra.mxu0 %v843
        %865 = vmatpush.bf16.msra.mxu0 %v841
        %866 = vmatpush.bf16.msra.mxu0 %v839
        %867 = vmatmul.bf16.gmra.mxu0 %v851
        %v868 = vpop.f32.mrf.mxu0
        %v869 = vadd.f32 0.0, %v868
        %v870 = vpop.f32.mrf.mxu0
        %871 = vdwg.mxu0
        %872 = vmatpush.bf16.msra.mxu0 0
        %873 = vmatpush.bf16.msra.mxu0 0
        %874 = vmatpush.bf16.msra.mxu0 0
        %875 = vmatpush.bf16.msra.mxu0 %v857
        %876 = vmatpush.bf16.msra.mxu0 %v846
        %877 = vmatpush.bf16.msra.mxu0 %v844
        %878 = vmatpush.bf16.msra.mxu0 %v842
        %879 = vmatpush.bf16.msra.mxu0 %v840
        %880 = vmatmul.bf16.gmra.mxu0 %v851
        %v881 = vpop.f32.mrf.mxu0
        %v882 = vadd.f32 0.0, %v881
        %v883 = vpop.f32.mrf.mxu0
        %884 = vdwg.mxu0
        %v885 = vadd.f32 %v869, %v882
        %886 = vadd.xlane.f32.xlu0 %v885
        %v887 = vpop.xlane.xlu0 %886
        %v888 = vmul.f32 %v887, %v608
        %v889 = vmul.f32 %v869, %v869
        %v890 = vmul.f32 %v882, %v882
        %v891 = vadd.f32 %v889, %v890
        %892 = vadd.xlane.f32.xlu0 %v891
        %v893 = vpop.xlane.xlu0 %892
        %v894 = vmul.f32 %v893, %v608
        %v895 = vsub.f32 %v869, %v888
        %v896 = vsub.f32 %v882, %v888
        %v897 = vmul.f32 %v888, %v888
        %v898 = vsub.f32 %v894, %v897
        %v899 = vadd.f32 %v898, 1e-05
        %v900 = vrsqrt.pop %v899
        %v901 = vmul.f32 %v900, %v899
        %v902 = vmul.f32 %v901, %v900
        %v903 = vmul.f32 0.5, %v902
        %v904 = vsub.f32 1.5, %v903
        %v905 = vmul.f32 %v900, %v904
        %vm906 = vweird.f32 %v899
        %vm907 = vweird.f32 %v900
        %vm908 = vmor %vm906, %vm907
        %v909 = vsel %vm908, %v900, %v905
        %v910 = vmul.f32 %v895, %v909
        %v911 = vmul.f32 %v896, %v909
        %912 = vst [vmem:[%s302] sm:$0xff] %v910
        %913 = vst [vmem:[%s302 + $0x8] sm:$0xff] %v911
        %s914 = sand.u32 %s163, 1
        %s915 = scalar_lea.sflag [#allocation4], %s914
        %s916 = sand.u32 %s163, 1
        %s917 = smul.addr %s916, 16
        %s918 = scalar_lea.vmem [#allocation8], %s917
        // Predicated region
        $region57: #{tpu_custom_call.1} parent=43 // pred_check
          %p919 = pneg %p173
        $region58: #{tpu_custom_call.1} parent=43 // pred_check_branch
          %921 = sbr.rel (%p919) target = $region60
        $region59: #{tpu_custom_call.1} parent=43 // pred_region
          %923 = vsyncadd %s915, 0
          %s924 = smul.addr %s24, 2
          %s925 = smul.addr %s924, 8
          %s926 = scalar_lea.hbm %s6, %s925
          %s928 = sshll.u32 %s918, 4
          %s929 = int_to_ptr.vmem [resolvable:$true] %s928
          %s930 = sshll.u32 %s926, 4
          %s931 = int_to_ptr.hbm [resolvable:$true] %s930
          %933 = dma.vmem_to_hbm [thread:$0]  %s929, 256, %s931, %s915
        $region60: #{tpu_custom_call.1} parent=43 // pred_fallthru
          _
      $region44: #{tpu_custom_call.1} parent=5 // pred_fallthru
        _
      %p934 = scmp.le.s32.totalorder 2, %s19
      // Predicated region
      $region61: #{tpu_custom_call.1} parent=5 // pred_check
        %p935 = pneg %p934
      $region62: #{tpu_custom_call.1} parent=5 // pred_check_branch
        %937 = sbr.rel (%p935) target = $region64
      $region63: #{tpu_custom_call.1} parent=5 // pred_region
        %s938 = ssub.s32 %s19, 2
        // Predicated region
        $region65: #{tpu_custom_call.1} parent=63 // pred_check
          %p939 = pneg %p179
        $region66: #{tpu_custom_call.1} parent=63 // pred_check_branch
          %941 = sbr.rel (%p939) target = $region68
        $region67: #{tpu_custom_call.1} parent=63 // pred_region
          %s942 = sand.u32 %s164, 1
          %s943 = scalar_lea.sflag [#allocation4], %s942
          %s944 = sand.u32 %s164, 1
          %s945 = smul.addr %s944, 16
          %s946 = scalar_lea.vmem [#allocation8], %s945
          %948 = dma.done %s943, 256
        $region68: #{tpu_custom_call.1} parent=63 // pred_fallthru
          _
      $region64: #{tpu_custom_call.1} parent=5 // pred_fallthru
        _
    $region6: #{tpu_custom_call.1} parent=1 // loop_footer
      %s23 = sadd.s32 1, %s19
    $region7: #{tpu_custom_call.1} parent=1 // loop_footer_branch
      %18 = sbr.rel target = $region3
    $region8: #{tpu_custom_call.1} parent=1 // loop_exit
      _
    %949 = vsyncpa [#allocation3], 1
    %s950 = scalar_lea.sflag [#allocation3], 1
    %951 = vsyncpa %s950, 1
    %952 = vsyncpa [#allocation6], 1
    %953 = vsyncpa [#allocation4], 1
    %s954 = scalar_lea.sflag [#allocation4], 1
    %955 = vsyncpa %s954, 1

</llo_original>
